<compile_context>
chip_gen: v7x
topology: tpu7x:2x2x1
jax: 0.10.0
libtpu: 0.0.40
codegen_flags: <defaults>
</compile_context>

<pallas_src>
import functools

import jax
import jax.numpy as jnp
from jax.experimental import pallas as pl
from jax.experimental.pallas import tpu as pltpu

EPS = 1e-5  # LayerNormalization eps


def _residual_kernel(x_ref, w_ref, blin_ref, alpha_ref, beta_ref, *rest,
                     p, keep_thresh):
    """One grid step = `block_b` batch elements.
       x_ref/o_ref (and rb_ref when dropout is active): (Bb, S, D)
       w_ref: (D, D) torch Linear layout (out, in)   blin_ref: (1, D)
       alpha_ref/beta_ref: (1,) scalars in SMEM."""
    if p > 0.0:
        rb_ref, o_ref = rest
    else:
        (o_ref,) = rest

    x = x_ref[...].astype(jnp.float32)                     # (Bb, S, D)
    Bb, S, D = x.shape

    # ---- LayerNormalization (replicates the PyTorch module exactly) ----
    # mean over the feature dim (dim=-1), keepdim
    row_mean = jnp.mean(x, axis=-1, keepdims=True)         # (Bb, S, 1)
    # torch.std(dim=1): std over the sequence axis, UNBIASED (divide by S-1).
    # One pass over the tile: sum and sum-of-squares.
    s1 = jnp.sum(x, axis=1, keepdims=True)                 # (Bb, 1, D)
    s2 = jnp.sum(x * x, axis=1, keepdims=True)             # (Bb, 1, D)
    seq_mean = s1 * (1.0 / S)
    var = (s2 - S * seq_mean * seq_mean) * (1.0 / (S - 1))
    std = jnp.sqrt(jnp.maximum(var, 0.0))                  # (Bb, 1, D)

    alpha = alpha_ref[0]
    beta = beta_ref[0]
    normed = alpha * (x - row_mean) / (std + EPS) + beta   # (Bb, S, D), f32

    # ---- sublayer: Linear(D, D): y = normed @ W^T + b ----
    # Fold (Bb, S) into one M dimension so the MXU sees Bb*S rows, and
    # contract against W's second axis directly (no in-kernel transpose).
    # Operands stay in W's dtype (bf16 if the wrapper downcast it once);
    # accumulation is f32.
    w = w_ref[...]                                         # (D, D), native dtype
    normed2d = normed.reshape(Bb * S, D).astype(w.dtype)
    prec = (jax.lax.Precision.HIGHEST if w.dtype == jnp.float32
            else jax.lax.Precision.DEFAULT)
    y = jax.lax.dot_general(
        normed2d, w,
        dimension_numbers=(((1,), (1,)), ((), ())),
        preferred_element_type=jnp.float32,
        precision=prec)                                    # (Bb*S, D) f32
    y = y + blin_ref[...].astype(jnp.float32)

    # ---- dropout (train-mode: keep w.p. 1-p, scale kept values by 1/(1-p)) ----
    # TODO(synk): PyTorch's dropout RNG stream cannot be reproduced bit-exactly;
    # the mask comes from jax.random.bits generated outside the kernel and is
    # applied here with a single uint32 threshold compare (keep <=> bits >= p*2^32).
    if p > 0.0:
        bits = rb_ref[...].reshape(Bb * S, D)              # uint32
        keep = bits >= jnp.uint32(keep_thresh)
        y = jnp.where(keep, y * (1.0 / (1.0 - p)), 0.0)

    # ---- residual add ----
    o_ref[...] = (x + y.reshape(Bb, S, D)).astype(o_ref.dtype)


def residual_connection(x, w, b_lin, alpha, beta, *, dropout_p=0.0,
                        rng_key=None, block_b=None, mxu_dtype=None):
    B, S, D = x.shape
    if S < 2:
        raise ValueError("sequence length must be >= 2 (unbiased std over dim=1)")
    p = float(dropout_p)
    if not (0.0 <= p < 1.0):
        raise ValueError("dropout_p must be in [0, 1)")

    if mxu_dtype is not None:
        w = w.astype(mxu_dtype)                # cast W once, outside the kernel
    b2 = b_lin.reshape(1, D)

    # Batch several batch elements per grid step so the matmul M-dim (Bb*S)
    # fills the MXU and per-step pipeline overhead is amortized, while keeping
    # the per-block f32 working set well under VMEM.
    # TODO(synk): for very large (Bb*S, D) blocks an inner lax.fori_loop over
    # ~128-row sub-tiles would further bound vreg live ranges.
    if block_b is None:
        budget = 8 * 1024 * 1024                     # per-block working-set target
        per_batch = S * D * 4 * 6                    # x, normed, y, out + temps (f32)
        cap = max(1, budget // max(per_batch, 1))
        block_b = 1
        for cand in range(1, B + 1):
            if B % cand == 0 and cand <= cap:
                block_b = cand
    assert B % block_b == 0
    grid = (B // block_b,)

    keep_thresh = min(int(p * 4294967296.0), 4294967295)
    kernel = functools.partial(_residual_kernel, p=p, keep_thresh=keep_thresh)

    in_specs = [
        pl.BlockSpec((block_b, S, D), lambda i: (i, 0, 0)),        # x
        pl.BlockSpec((D, D), lambda i: (0, 0)),                    # W (resident)
        pl.BlockSpec((1, D), lambda i: (0, 0)),                    # linear bias
        pl.BlockSpec(memory_space=pltpu.MemorySpace.SMEM),         # alpha
        pl.BlockSpec(memory_space=pltpu.MemorySpace.SMEM),         # beta
    ]
    args = [x, w, b2, alpha, beta]
    if p > 0.0:
        if rng_key is None:
            rng_key = jax.random.PRNGKey(0)
        bits = jax.random.bits(rng_key, (B, S, D), dtype=jnp.uint32)
        in_specs.append(pl.BlockSpec((block_b, S, D), lambda i: (i, 0, 0)))
        args.append(bits)

    return pl.pallas_call(
        kernel,
        out_shape=jax.ShapeDtypeStruct((B, S, D), x.dtype),
        grid=grid,
        in_specs=in_specs,
        out_specs=pl.BlockSpec((block_b, S, D), lambda i: (i, 0, 0)),
        compiler_params=pltpu.CompilerParams(
            # batch blocks are fully independent -> shard across TensorCores
            dimension_semantics=("parallel",),
            vmem_limit_bytes=48 * 1024 * 1024,
        ),
    )(*args)


def _reference_no_dropout(x, w, b_lin, alpha, beta):
    """Pure-JAX mirror of the PyTorch forward (dropout disabled)."""
    mean = x.mean(axis=-1, keepdims=True)
    std = x.std(axis=1, keepdims=True, ddof=1)              # torch.std: unbiased
    normed = alpha * (x - mean) / (std + EPS) + beta
    y = jnp.einsum("bsd,ed->bse", normed, w,
                   precision=jax.lax.Precision.HIGHEST) + b_lin
    return x + y


if __name__ == "__main__":
    B, S, D = 4, 8, 128                       # lane-dense D (multiple of 128)
    key = jax.random.PRNGKey(0)
    kx, kw, kd = jax.random.split(key, 3)

    x = jax.random.normal(kx, (B, S, D), dtype=jnp.float32)

    # Deterministic parameter init (shapes from the module __init__):
    #   LayerNormalization: alpha = ones(1), bias = zeros(1)
    #   sublayer Linear(D, D): W ~ N(0, 1/D) in torch (out, in) layout, b = 0
    alpha = jnp.ones((1,), dtype=jnp.float32)
    beta = jnp.zeros((1,), dtype=jnp.float32)
    w = jax.random.normal(kw, (D, D), dtype=jnp.float32) / jnp.sqrt(D)
    b_lin = jnp.zeros((D,), dtype=jnp.float32)

    # Deterministic path (dropout off, f32 matmul): check vs pure-JAX reference.
    out0 = jax.block_until_ready(
        residual_connection(x, w, b_lin, alpha, beta, dropout_p=0.0))
    ref0 = _reference_no_dropout(x, w, b_lin, alpha, beta)
    assert out0.shape == (B, S, D)
    assert jnp.allclose(out0, ref0, atol=1e-3, rtol=1e-3), "mismatch vs reference"

    # Train-mode path: dropout p=0.1 with bf16 MXU operands (f32 accumulation).
    out1 = jax.block_until_ready(
        residual_connection(x, w, b_lin, alpha, beta, dropout_p=0.1,
                            rng_key=kd, mxu_dtype=jnp.bfloat16))
    assert out1.shape == (B, S, D)
    assert bool(jnp.all(jnp.isfinite(out1)))

    print("KERNEL_OK")
</pallas_src>

<mosaic_0001>
module attributes {stable_mosaic.version = 11 : i64} {
  func.func @_residual_kernel(%arg0: i32, %arg1: memref<4x8x128xf32, #tpu.memory_space<vmem>>, %arg2: memref<128x128xf32, #tpu.memory_space<vmem>>, %arg3: memref<1x128xf32, #tpu.memory_space<vmem>>, %arg4: memref<1xf32, #tpu.memory_space<smem>>, %arg5: memref<1xf32, #tpu.memory_space<smem>>, %arg6: memref<4x8x128xf32, #tpu.memory_space<vmem>>) attributes {dimension_semantics = [#tpu.dimension_semantics<parallel>], iteration_bounds = array<i64: 1>, scalar_prefetch = 0 : i64, scratch_operands = 0 : i64, tpu.core_type = #tpu.core_type<tc>, window_params = [{transform_indices = @transform_0, window_bounds = array<i64: 4, 8, 128>}, {pipeline_mode = #tpu.pipeline_mode<synchronous>, transform_indices = @transform_1, window_bounds = array<i64: 128, 128>}, {pipeline_mode = #tpu.pipeline_mode<synchronous>, transform_indices = @transform_2, window_bounds = array<i64: 1, 128>}, {transform_indices = @transform_3, window_bounds = array<i64: 1>}, {transform_indices = @transform_4, window_bounds = array<i64: 1>}, {transform_indices = @transform_5, window_bounds = array<i64: 4, 8, 128>}]} {
    %c0 = arith.constant 0 : index
    %c0_0 = arith.constant 0 : index
    %c0_1 = arith.constant 0 : index
    %0 = vector.load %arg1[%c0, %c0_0, %c0_1] : memref<4x8x128xf32, #tpu.memory_space<vmem>>, vector<4x8x128xf32>
    %cst = arith.constant dense<0.000000e+00> : vector<4x8xf32>
    %1 = vector.multi_reduction <add>, %0, %cst [2] : vector<4x8x128xf32> to vector<4x8xf32>
    %2 = vector.shape_cast %1 : vector<4x8xf32> to vector<4x8x1xf32>
    %cst_2 = arith.constant 1.280000e+02 : f32
    %3 = vector.broadcast %cst_2 : f32 to vector<4x8x1xf32>
    %4 = arith.divf %2, %3 : vector<4x8x1xf32>
    %cst_3 = arith.constant dense<0.000000e+00> : vector<4x128xf32>
    %5 = vector.multi_reduction <add>, %0, %cst_3 [1] : vector<4x8x128xf32> to vector<4x128xf32>
    %6 = vector.shape_cast %5 : vector<4x128xf32> to vector<4x1x128xf32>
    %7 = arith.mulf %0, %0 : vector<4x8x128xf32>
    %cst_4 = arith.constant dense<0.000000e+00> : vector<4x128xf32>
    %8 = vector.multi_reduction <add>, %7, %cst_4 [1] : vector<4x8x128xf32> to vector<4x128xf32>
    %9 = vector.shape_cast %8 : vector<4x128xf32> to vector<4x1x128xf32>
    %cst_5 = arith.constant 1.250000e-01 : f32
    %10 = vector.broadcast %cst_5 : f32 to vector<4x1x128xf32>
    %11 = arith.mulf %6, %10 : vector<4x1x128xf32>
    %cst_6 = arith.constant 8.000000e+00 : f32
    %12 = vector.broadcast %cst_6 : f32 to vector<4x1x128xf32>
    %13 = arith.mulf %12, %11 : vector<4x1x128xf32>
    %14 = arith.mulf %13, %11 : vector<4x1x128xf32>
    %15 = arith.subf %9, %14 : vector<4x1x128xf32>
    %cst_7 = arith.constant 0.142857149 : f32
    %16 = vector.broadcast %cst_7 : f32 to vector<4x1x128xf32>
    %17 = arith.mulf %15, %16 : vector<4x1x128xf32>
    %cst_8 = arith.constant 0.000000e+00 : f32
    %18 = vector.broadcast %cst_8 : f32 to vector<4x1x128xf32>
    %19 = arith.maximumf %17, %18 : vector<4x1x128xf32>
    %20 = math.sqrt %19 : vector<4x1x128xf32>
    %c0_9 = arith.constant 0 : index
    %21 = memref.load %arg4[%c0_9] : memref<1xf32, #tpu.memory_space<smem>>
    %c0_10 = arith.constant 0 : index
    %22 = memref.load %arg5[%c0_10] : memref<1xf32, #tpu.memory_space<smem>>
    %23 = vector.broadcast %4 : vector<4x8x1xf32> to vector<4x8x128xf32>
    %24 = arith.subf %0, %23 : vector<4x8x128xf32>
    %25 = vector.broadcast %21 : f32 to vector<4x8x128xf32>
    %26 = arith.mulf %25, %24 : vector<4x8x128xf32>
    %cst_11 = arith.constant 9.99999974E-6 : f32
    %27 = vector.broadcast %cst_11 : f32 to vector<4x1x128xf32>
    %28 = arith.addf %20, %27 : vector<4x1x128xf32>
    %29 = vector.broadcast %28 : vector<4x1x128xf32> to vector<4x8x128xf32>
    %30 = arith.divf %26, %29 : vector<4x8x128xf32>
    %31 = vector.broadcast %22 : f32 to vector<4x8x128xf32>
    %32 = arith.addf %30, %31 : vector<4x8x128xf32>
    %c0_12 = arith.constant 0 : index
    %c0_13 = arith.constant 0 : index
    %33 = vector.load %arg2[%c0_12, %c0_13] : memref<128x128xf32, #tpu.memory_space<vmem>>, vector<128x128xf32>
    %34 = vector.shape_cast %32 : vector<4x8x128xf32> to vector<32x128xf32>
    %cst_14 = arith.constant dense<0.000000e+00> : vector<32x128xf32>
    %35 = tpu.matmul %34, %33, %cst_14 {dimension_numbers = #tpu.dot_dimension_numbers<[1], [1], [0], [0], [0, 0, 1, 0], [], []>, precision = #tpu.contract_precision<fp32>} : vector<32x128xf32>, vector<128x128xf32>, vector<32x128xf32> -> vector<32x128xf32>
    %c0_15 = arith.constant 0 : index
    %c0_16 = arith.constant 0 : index
    %36 = vector.load %arg3[%c0_15, %c0_16] : memref<1x128xf32, #tpu.memory_space<vmem>>, vector<1x128xf32>
    %37 = vector.broadcast %36 : vector<1x128xf32> to vector<32x128xf32>
    %38 = arith.addf %35, %37 : vector<32x128xf32>
    %39 = vector.shape_cast %38 : vector<32x128xf32> to vector<4x8x128xf32>
    %40 = arith.addf %0, %39 : vector<4x8x128xf32>
    %c0_17 = arith.constant 0 : index
    %c0_18 = arith.constant 0 : index
    %c0_19 = arith.constant 0 : index
    %41 = vector.load %arg6[%c0_17, %c0_18, %c0_19] : memref<4x8x128xf32, #tpu.memory_space<vmem>>, vector<4x8x128xf32>
    tpu.vector_store %arg6[%c0_17, %c0_18, %c0_19], %40 {strides = array<i32>} : memref<4x8x128xf32, #tpu.memory_space<vmem>>, vector<4x8x128xf32>,
    return
  }
  func.func @transform_0(%arg0: i32) -> (i32, i32, i32) {
    %c0_i32 = arith.constant 0 : i32
    %c0_i32_0 = arith.constant 0 : i32
    %c0_i32_1 = arith.constant 0 : i32
    return %arg0, %c0_i32, %c0_i32_0 : i32, i32, i32
  }
  func.func @transform_1(%arg0: i32) -> (i32, i32) {
    %c0_i32 = arith.constant 0 : i32
    %c0_i32_0 = arith.constant 0 : i32
    %c0_i32_1 = arith.constant 0 : i32
    return %c0_i32, %c0_i32_0 : i32, i32
  }
  func.func @transform_2(%arg0: i32) -> (i32, i32) {
    %c0_i32 = arith.constant 0 : i32
    %c0_i32_0 = arith.constant 0 : i32
    %c0_i32_1 = arith.constant 0 : i32
    return %c0_i32, %c0_i32_0 : i32, i32
  }
  func.func @transform_3(%arg0: i32) -> i32 {
    %c0_i32 = arith.constant 0 : i32
    %c0_i32_0 = arith.constant 0 : i32
    return %c0_i32 : i32
  }
  func.func @transform_4(%arg0: i32) -> i32 {
    %c0_i32 = arith.constant 0 : i32
    %c0_i32_0 = arith.constant 0 : i32
    return %c0_i32 : i32
  }
  func.func @transform_5(%arg0: i32) -> (i32, i32, i32) {
    %c0_i32 = arith.constant 0 : i32
    %c0_i32_0 = arith.constant 0 : i32
    %c0_i32_1 = arith.constant 0 : i32
    return %arg0, %c0_i32, %c0_i32_0 : i32, i32, i32
  }
}

</mosaic_0001>

<llo_original>
// kernel: tpu_custom_call.1
$region0: #{tpu_custom_call.1}
  #allocation0 [shape = 'u32[]', space=smem, size = 0x4, offset = 0x4, fixed_abs, tag = 'smem constant byte address 0x4 - core index']
  #allocation1 [shape = 'u32[144,128]{1,0:T(1,128)}', space=vmem, size = 0x12000, scoped, tag = 'internal scratch']
  #allocation2 [shape = 'f32[1]{0:T(128)S(6)}', space=smem, size = 0x200, scoped, tag = 'scoped memory for tpu_custom_call.1']
  #allocation3 [shape = 'f32[1]{0:T(128)S(6)}', space=smem, size = 0x200, scoped, tag = 'scoped memory for tpu_custom_call.1']
  %s0 = inlined_call_operand.hbm [shape: f32[4,8,128], index: 0, kind: input, shape index: {}]
  %s1 = inlined_call_operand.hbm [shape: f32[128,128], index: 1, kind: input, shape index: {}]
  %s2 = inlined_call_operand.vmem [shape: f32[1,128], index: 2, kind: input, shape index: {}]
  %s3 = inlined_call_operand.<no memory space> [shape: f32[1], index: 3, kind: input, shape index: {}]
  %s4 = inlined_call_operand.<no memory space> [shape: f32[1], index: 4, kind: input, shape index: {}]
  %s5 = inlined_call_operand.hbm [shape: f32[4,8,128], index: 5, kind: output, shape index: {}]
  %s6 = sld [smem:[#allocation0]]
  $region38: #{tpu_custom_call.1} parent=0
    _
  %s8 = ssub.s32 1, %s6
  %s9 = scalar_select 0, %s8, %s6
  %10 = sst [smem:[#allocation2]] %s3
  %11 = sst [smem:[#allocation3]] %s4
  $region1: #{tpu_custom_call.1} parent=0
    #allocation4 [shape = 'u8[16384]{0}', space=vmem, size = 0x4000, scoped, tag = 'input window, operand 0, single buffered']
    #allocation5 [shape = 's32[1]{0}', space=sflag, size = 0x4, scoped, tag = 'scoped memory for tpu_custom_call.1']
    #allocation6 [shape = 's32[1]{0}', space=sflag, size = 0x4, scoped, tag = 'scoped memory for tpu_custom_call.1']
    #allocation7 [shape = 'u8[65536]{0}', space=vmem, size = 0x10000, scoped, tag = 'input window, operand 1, single buffered']
    #allocation8 [shape = 's32[1]{0}', space=sflag, size = 0x4, scoped, tag = 'scoped memory for tpu_custom_call.1']
    #allocation9 [shape = 'u8[16384]{0}', space=vmem, size = 0x4000, scoped, tag = 'output window, operand 0, single buffered']
    %12 = vsyncpa [#allocation5], 0
    %13 = vsyncpa [#allocation8], 0
    %14 = vsyncpa [#allocation6], 0
    // Predicated region
    $region2: #{tpu_custom_call.1} parent=1 // pred_check
      _
    $region3: #{tpu_custom_call.1} parent=1 // pred_check_branch
      %16 = sbr.rel (0) target = $region5
    $region4: #{tpu_custom_call.1} parent=1 // pred_region
      %s18 = ssub.s32 512, 512
      %19 = vsyncadd [#allocation5], %s18
      %s20 = sshll.u32 [#allocation4], 4
      %s21 = int_to_ptr.vmem [resolvable:$true] %s20
      %26 = dma.hbm_to_vmem [thread:$0]  %s0, 512, %s21, [#allocation5], 128, 128, 8
    $region5: #{tpu_custom_call.1} parent=1 // pred_fallthru
      _
    // Predicated region
    $region6: #{tpu_custom_call.1} parent=1 // pred_check
      _
    $region7: #{tpu_custom_call.1} parent=1 // pred_check_branch
      %28 = sbr.rel (0) target = $region9
    $region8: #{tpu_custom_call.1} parent=1 // pred_region
      %s30 = ssub.s32 2048, 2048
      %31 = vsyncadd [#allocation8], %s30
      %s32 = sshll.u32 [#allocation7], 4
      %s33 = int_to_ptr.vmem [resolvable:$true] %s32
      %38 = dma.hbm_to_vmem [thread:$0]  %s1, 2048, %s33, [#allocation8], 128, 128, 8
    $region9: #{tpu_custom_call.1} parent=1 // pred_fallthru
      _
    // Predicated region
    $region10: #{tpu_custom_call.1} parent=1 // pred_check
      _
    $region11: #{tpu_custom_call.1} parent=1 // pred_check_branch
      %40 = sbr.rel (0) target = $region13
    $region12: #{tpu_custom_call.1} parent=1 // pred_region
      _
    $region13: #{tpu_custom_call.1} parent=1 // pred_fallthru
      _
    // Predicated region
    $region14: #{tpu_custom_call.1} parent=1 // pred_check
      _
    $region15: #{tpu_custom_call.1} parent=1 // pred_check_branch
      %42 = sbr.rel (0) target = $region17
    $region16: #{tpu_custom_call.1} parent=1 // pred_region
      _
    $region17: #{tpu_custom_call.1} parent=1 // pred_fallthru
      _
    // Predicated region
    $region18: #{tpu_custom_call.1} parent=1 // pred_check
      _
    $region19: #{tpu_custom_call.1} parent=1 // pred_check_branch
      %44 = sbr.rel (0) target = $region21
    $region20: #{tpu_custom_call.1} parent=1 // pred_region
      _
    $region21: #{tpu_custom_call.1} parent=1 // pred_fallthru
      _
    // Predicated region
    $region22: #{tpu_custom_call.1} parent=1 // pred_check
      _
    $region23: #{tpu_custom_call.1} parent=1 // pred_check_branch
      %46 = sbr.rel (0) target = $region25
    $region24: #{tpu_custom_call.1} parent=1 // pred_region
      %47 = dma.done [#allocation5], 512
    $region25: #{tpu_custom_call.1} parent=1 // pred_fallthru
      _
    // Predicated region
    $region26: #{tpu_custom_call.1} parent=1 // pred_check
      _
    $region27: #{tpu_custom_call.1} parent=1 // pred_check_branch
      %49 = sbr.rel (0) target = $region29
    $region28: #{tpu_custom_call.1} parent=1 // pred_region
      %50 = dma.done [#allocation8], 2048
    $region29: #{tpu_custom_call.1} parent=1 // pred_fallthru
      _
    %v51 = vld [vmem:[#allocation4] sm:$0xff]
    %v52 = vld [vmem:[#allocation4 + $0x8] sm:$0xff]
    %v53 = vld [vmem:[#allocation4 + $0x10] sm:$0xff]
    %v54 = vld [vmem:[#allocation4 + $0x18] sm:$0xff]
    %55 = vadd.xlane.f32.xlu0 %v51
    %v56 = vpop.xlane.xlu0 %55
    %57 = vadd.xlane.f32.xlu0 %v52
    %v58 = vpop.xlane.xlu0 %57
    %59 = vadd.xlane.f32.xlu0 %v53
    %v60 = vpop.xlane.xlu0 %59
    %61 = vadd.xlane.f32.xlu0 %v54
    %v62 = vpop.xlane.xlu0 %61
    %v63 = vrcp.pop 128.0
    %v64 = vmul.f32 %v56, %v63
    %v65 = vmul.f32 %v58, %v63
    %v66 = vmul.f32 %v60, %v63
    %v67 = vmul.f32 %v62, %v63
    %v68 = vrot.slane %v51, 4
    %v69 = vadd.f32 %v51, %v68
    %v70 = vrot.slane %v69, 2
    %v71 = vadd.f32 %v69, %v70
    %v72 = vrot.slane %v71, 1
    %v73 = vadd.f32 %v71, %v72
    %v74 = vrot.slane %v52, 4
    %v75 = vadd.f32 %v52, %v74
    %v76 = vrot.slane %v75, 2
    %v77 = vadd.f32 %v75, %v76
    %v78 = vrot.slane %v77, 1
    %v79 = vadd.f32 %v77, %v78
    %v80 = vrot.slane %v53, 4
    %v81 = vadd.f32 %v53, %v80
    %v82 = vrot.slane %v81, 2
    %v83 = vadd.f32 %v81, %v82
    %v84 = vrot.slane %v83, 1
    %v85 = vadd.f32 %v83, %v84
    %v86 = vrot.slane %v54, 4
    %v87 = vadd.f32 %v54, %v86
    %v88 = vrot.slane %v87, 2
    %v89 = vadd.f32 %v87, %v88
    %v90 = vrot.slane %v89, 1
    %v91 = vadd.f32 %v89, %v90
    %v92 = vmul.f32 %v51, %v51
    %v93 = vmul.f32 %v52, %v52
    %v94 = vmul.f32 %v53, %v53
    %v95 = vmul.f32 %v54, %v54
    %v96 = vrot.slane %v92, 4
    %v97 = vadd.f32 %v92, %v96
    %v98 = vrot.slane %v97, 2
    %v99 = vadd.f32 %v97, %v98
    %v100 = vrot.slane %v99, 1
    %v101 = vadd.f32 %v99, %v100
    %v102 = vrot.slane %v93, 4
    %v103 = vadd.f32 %v93, %v102
    %v104 = vrot.slane %v103, 2
    %v105 = vadd.f32 %v103, %v104
    %v106 = vrot.slane %v105, 1
    %v107 = vadd.f32 %v105, %v106
    %v108 = vrot.slane %v94, 4
    %v109 = vadd.f32 %v94, %v108
    %v110 = vrot.slane %v109, 2
    %v111 = vadd.f32 %v109, %v110
    %v112 = vrot.slane %v111, 1
    %v113 = vadd.f32 %v111, %v112
    %v114 = vrot.slane %v95, 4
    %v115 = vadd.f32 %v95, %v114
    %v116 = vrot.slane %v115, 2
    %v117 = vadd.f32 %v115, %v116
    %v118 = vrot.slane %v117, 1
    %v119 = vadd.f32 %v117, %v118
    %v120 = vmul.f32 %v73, 0.125
    %v121 = vmul.f32 %v79, 0.125
    %v122 = vmul.f32 %v85, 0.125
    %v123 = vmul.f32 %v91, 0.125
    %v124 = vmul.f32 %v120, 8.0
    %v125 = vmul.f32 %v121, 8.0
    %v126 = vmul.f32 %v122, 8.0
    %v127 = vmul.f32 %v123, 8.0
    %v128 = vmul.f32 %v124, %v120
    %v129 = vmul.f32 %v125, %v121
    %v130 = vmul.f32 %v126, %v122
    %v131 = vmul.f32 %v127, %v123
    %v132 = vsub.f32 %v101, %v128
    %v133 = vsub.f32 %v107, %v129
    %v134 = vsub.f32 %v113, %v130
    %v135 = vsub.f32 %v119, %v131
    %v136 = vmul.f32 %v132, 0.14285715
    %v137 = vmul.f32 %v133, 0.14285715
    %v138 = vmul.f32 %v134, 0.14285715
    %v139 = vmul.f32 %v135, 0.14285715
    %v140 = vmax.f32 %v136, 0.0
    %v141 = vmax.f32 %v137, 0.0
    %v142 = vmax.f32 %v138, 0.0
    %v143 = vmax.f32 %v139, 0.0
    %v144 = vrsqrt.pop %v140
    %v145 = vmul.f32 %v140, %v144
    %vm146 = vcmp.eq.f32.partialorder %v140, inf
    %v147 = vsel %vm146, %v140, %v145
    %vm148 = vcmp.eq.f32.partialorder %v140, 0.0
    %v149 = vand.u32 %v140, 2147483648
    %v150 = vsel %vm148, %v149, %v147
    %v151 = vrsqrt.pop %v141
    %v152 = vmul.f32 %v141, %v151
    %vm153 = vcmp.eq.f32.partialorder %v141, inf
    %v154 = vsel %vm153, %v141, %v152
    %vm155 = vcmp.eq.f32.partialorder %v141, 0.0
    %v156 = vand.u32 %v141, 2147483648
    %v157 = vsel %vm155, %v156, %v154
    %v158 = vrsqrt.pop %v142
    %v159 = vmul.f32 %v142, %v158
    %vm160 = vcmp.eq.f32.partialorder %v142, inf
    %v161 = vsel %vm160, %v142, %v159
    %vm162 = vcmp.eq.f32.partialorder %v142, 0.0
    %v163 = vand.u32 %v142, 2147483648
    %v164 = vsel %vm162, %v163, %v161
    %v165 = vrsqrt.pop %v143
    %v166 = vmul.f32 %v143, %v165
    %vm167 = vcmp.eq.f32.partialorder %v143, inf
    %v168 = vsel %vm167, %v143, %v166
    %vm169 = vcmp.eq.f32.partialorder %v143, 0.0
    %v170 = vand.u32 %v143, 2147483648
    %v171 = vsel %vm169, %v170, %v168
    %s172 = sld [smem:[#allocation2]]
    %s173 = sld [smem:[#allocation3]]
    %v174 = vsub.f32 %v51, %v64
    %v175 = vsub.f32 %v52, %v65
    %v176 = vsub.f32 %v53, %v66
    %v177 = vsub.f32 %v54, %v67
    %v178 = vstv %s172
    %v179 = vmul.f32 %v178, %v174
    %v180 = vmul.f32 %v178, %v175
    %v181 = vmul.f32 %v178, %v176
    %v182 = vmul.f32 %v178, %v177
    %v183 = vadd.f32 %v150, 1e-05
    %v184 = vadd.f32 %v157, 1e-05
    %v185 = vadd.f32 %v164, 1e-05
    %v186 = vadd.f32 %v171, 1e-05
    %v187 = vrcp.pop %v183
    %v188 = vmul.f32 %v179, %v187
    %v189 = vrcp.pop %v184
    %v190 = vmul.f32 %v180, %v189
    %v191 = vrcp.pop %v185
    %v192 = vmul.f32 %v181, %v191
    %v193 = vrcp.pop %v186
    %v194 = vmul.f32 %v182, %v193
    %v195 = vstv %s173
    %v196 = vadd.f32 %v188, %v195
    %v197 = vadd.f32 %v190, %v195
    %v198 = vadd.f32 %v192, %v195
    %v199 = vadd.f32 %v194, %v195
    %v200 = vld [vmem:[#allocation7] sm:$0xff]
    %v201 = vld [vmem:[#allocation7 + $0x8] sm:$0xff]
    %v202 = vld [vmem:[#allocation7 + $0x10] sm:$0xff]
    %v203 = vld [vmem:[#allocation7 + $0x18] sm:$0xff]
    %v204 = vld [vmem:[#allocation7 + $0x20] sm:$0xff]
    %v205 = vld [vmem:[#allocation7 + $0x28] sm:$0xff]
    %v206 = vld [vmem:[#allocation7 + $0x30] sm:$0xff]
    %v207 = vld [vmem:[#allocation7 + $0x38] sm:$0xff]
    %v208 = vld [vmem:[#allocation7 + $0x40] sm:$0xff]
    %v209 = vld [vmem:[#allocation7 + $0x48] sm:$0xff]
    %v210 = vld [vmem:[#allocation7 + $0x50] sm:$0xff]
    %v211 = vld [vmem:[#allocation7 + $0x58] sm:$0xff]
    %v212 = vld [vmem:[#allocation7 + $0x60] sm:$0xff]
    %v213 = vld [vmem:[#allocation7 + $0x68] sm:$0xff]
    %v214 = vld [vmem:[#allocation7 + $0x70] sm:$0xff]
    %v215 = vld [vmem:[#allocation7 + $0x78] sm:$0xff]
    %v216 = vld [vmem:[%s2] sm:$0x1]
    %v218 = vlaneseq
    %v219 = vshrl.u32 %v218, 7
    %v220 = vsub.s32 0, %v219
    %v221 = vrot.slane %v216, %v220
    %223 = vmatprep.subr.mxu0 0.0
    %v224 = vand.u32 %v200, 4294901760
    %225 = vmatpush1.xpose.msra.mxu0 %v224
    %226 = vmatprep.subr.mxu0 0.0
    %v227 = vand.u32 %v201, 4294901760
    %228 = vmatpush1.xpose.msra.mxu0 %v227
    %229 = vmatprep.subr.mxu0 0.0
    %v230 = vand.u32 %v202, 4294901760
    %231 = vmatpush1.xpose.msra.mxu0 %v230
    %232 = vmatprep.subr.mxu0 0.0
    %v233 = vand.u32 %v203, 4294901760
    %234 = vmatpush1.xpose.msra.mxu0 %v233
    %235 = vmatprep.subr.mxu0 0.0
    %v236 = vand.u32 %v204, 4294901760
    %237 = vmatpush1.xpose.msra.mxu0 %v236
    %238 = vmatprep.subr.mxu0 0.0
    %v239 = vand.u32 %v205, 4294901760
    %240 = vmatpush1.xpose.msra.mxu0 %v239
    %241 = vmatprep.subr.mxu0 0.0
    %v242 = vand.u32 %v206, 4294901760
    %243 = vmatpush1.xpose.msra.mxu0 %v242
    %244 = vmatprep.subr.mxu0 0.0
    %v245 = vand.u32 %v207, 4294901760
    %246 = vmatpush1.xpose.msra.mxu0 %v245
    %247 = vmatprep.subr.mxu0 0.0
    %v248 = vand.u32 %v208, 4294901760
    %249 = vmatpush1.xpose.msra.mxu0 %v248
    %250 = vmatprep.subr.mxu0 0.0
    %v251 = vand.u32 %v209, 4294901760
    %252 = vmatpush1.xpose.msra.mxu0 %v251
    %253 = vmatprep.subr.mxu0 0.0
    %v254 = vand.u32 %v210, 4294901760
    %255 = vmatpush1.xpose.msra.mxu0 %v254
    %256 = vmatprep.subr.mxu0 0.0
    %v257 = vand.u32 %v211, 4294901760
    %258 = vmatpush1.xpose.msra.mxu0 %v257
    %259 = vmatprep.subr.mxu0 0.0
    %v260 = vand.u32 %v212, 4294901760
    %261 = vmatpush1.xpose.msra.mxu0 %v260
    %262 = vmatprep.subr.mxu0 0.0
    %v263 = vand.u32 %v213, 4294901760
    %264 = vmatpush1.xpose.msra.mxu0 %v263
    %265 = vmatprep.subr.mxu0 0.0
    %v266 = vand.u32 %v214, 4294901760
    %267 = vmatpush1.xpose.msra.mxu0 %v266
    %268 = vmatprep.subr.mxu0 0.0
    %v269 = vand.u32 %v215, 4294901760
    %270 = vmatpush1.xpose.msra.mxu0 %v269
    %271 = vmatprep.subr.mxu0 0.0
    %272 = vmatpush1.xpose.msra.mxu0 0.0
    %273 = vmatprep.subr.mxu0 0.0
    %274 = vmatpush1.xpose.msra.mxu0 0.0
    %275 = vmatprep.subr.mxu0 0.0
    %276 = vmatpush1.xpose.msra.mxu0 0.0
    %277 = vmatprep.subr.mxu0 0.0
    %278 = vmatpush1.xpose.msra.mxu0 0.0
    %279 = vmatprep.subr.mxu0 0.0
    %280 = vmatpush1.xpose.msra.mxu0 0.0
    %281 = vmatprep.subr.mxu0 0.0
    %282 = vmatpush1.xpose.msra.mxu0 0.0
    %283 = vmatprep.subr.mxu0 0.0
    %284 = vmatpush1.xpose.msra.mxu0 0.0
    %285 = vmatprep.subr.mxu0 0.0
    %286 = vmatpush1.xpose.msra.mxu0 0.0
    %287 = vmatprep.subr.mxu0 0.0
    %288 = vmatpush1.xpose.msra.mxu0 0.0
    %289 = vmatprep.subr.mxu0 0.0
    %290 = vmatpush1.xpose.msra.mxu0 0.0
    %291 = vmatprep.subr.mxu0 0.0
    %292 = vmatpush1.xpose.msra.mxu0 0.0
    %293 = vmatprep.subr.mxu0 0.0
    %294 = vmatpush1.xpose.msra.mxu0 0.0
    %295 = vmatprep.subr.mxu0 0.0
    %296 = vmatpush1.xpose.msra.mxu0 0.0
    %297 = vmatprep.subr.mxu0 0.0
    %298 = vmatpush1.xpose.msra.mxu0 0.0
    %299 = vmatprep.subr.mxu0 0.0
    %300 = vmatpush1.xpose.msra.mxu0 0.0
    %301 = vmatprep.subr.mxu0 0.0
    %302 = vmatpush1.xpose.msra.mxu0 0.0
    %303 = vmatprep.mubr.f32.mxu0 0.0
    %v304 = vand.u32 %v196, 4294901760
    %v305 = vsub.f32 %v196, %v304
    %v306 = vand.u32 %v305, 4294901760
    %v307 = vsub.f32 %v305, %v306
    %v308 = vand.u32 %v307, 4294901760
    %309 = vmatmul.mubr.f32.gmra.mrb[0].mxu0 %v308
    %v310 = vpop.f32.mrb[0].mxu0
    %v311 = vadd.f32 %v221, %v310
    %v312 = vpop.f32.mrb[0].mxu0
    %313 = vmatprep.mubr.f32.mxu0 0.0
    %v314 = vand.u32 %v197, 4294901760
    %v315 = vsub.f32 %v197, %v314
    %v316 = vand.u32 %v315, 4294901760
    %v317 = vsub.f32 %v315, %v316
    %v318 = vand.u32 %v317, 4294901760
    %319 = vmatmul.mubr.f32.gmra.mrb[0].mxu0 %v318
    %v320 = vpop.f32.mrb[0].mxu0
    %v321 = vadd.f32 %v221, %v320
    %v322 = vpop.f32.mrb[0].mxu0
    %323 = vmatprep.mubr.f32.mxu0 0.0
    %v324 = vand.u32 %v198, 4294901760
    %v325 = vsub.f32 %v198, %v324
    %v326 = vand.u32 %v325, 4294901760
    %v327 = vsub.f32 %v325, %v326
    %v328 = vand.u32 %v327, 4294901760
    %329 = vmatmul.mubr.f32.gmra.mrb[0].mxu0 %v328
    %v330 = vpop.f32.mrb[0].mxu0
    %v331 = vadd.f32 %v221, %v330
    %v332 = vpop.f32.mrb[0].mxu0
    %333 = vmatprep.mubr.f32.mxu0 0.0
    %v334 = vand.u32 %v199, 4294901760
    %v335 = vsub.f32 %v199, %v334
    %v336 = vand.u32 %v335, 4294901760
    %v337 = vsub.f32 %v335, %v336
    %v338 = vand.u32 %v337, 4294901760
    %339 = vmatmul.mubr.f32.gmra.mrb[0].mxu0 %v338
    %v340 = vpop.f32.mrb[0].mxu0
    %v341 = vadd.f32 %v221, %v340
    %v342 = vpop.f32.mrb[0].mxu0
    %343 = vdwg.mxu0
    %344 = vmatprep.subr.mxu0 0.0
    %v345 = vand.u32 %v200, 4294901760
    %v346 = vsub.f32 %v200, %v345
    %v347 = vand.u32 %v346, 4294901760
    %v348 = vsub.f32 %v346, %v347
    %v349 = vand.u32 %v348, 4294901760
    %350 = vmatpush1.xpose.msra.mxu0 %v349
    %351 = vmatprep.subr.mxu0 0.0
    %v352 = vand.u32 %v201, 4294901760
    %v353 = vsub.f32 %v201, %v352
    %v354 = vand.u32 %v353, 4294901760
    %v355 = vsub.f32 %v353, %v354
    %v356 = vand.u32 %v355, 4294901760
    %357 = vmatpush1.xpose.msra.mxu0 %v356
    %358 = vmatprep.subr.mxu0 0.0
    %v359 = vand.u32 %v202, 4294901760
    %v360 = vsub.f32 %v202, %v359
    %v361 = vand.u32 %v360, 4294901760
    %v362 = vsub.f32 %v360, %v361
    %v363 = vand.u32 %v362, 4294901760
    %364 = vmatpush1.xpose.msra.mxu0 %v363
    %365 = vmatprep.subr.mxu0 0.0
    %v366 = vand.u32 %v203, 4294901760
    %v367 = vsub.f32 %v203, %v366
    %v368 = vand.u32 %v367, 4294901760
    %v369 = vsub.f32 %v367, %v368
    %v370 = vand.u32 %v369, 4294901760
    %371 = vmatpush1.xpose.msra.mxu0 %v370
    %372 = vmatprep.subr.mxu0 0.0
    %v373 = vand.u32 %v204, 4294901760
    %v374 = vsub.f32 %v204, %v373
    %v375 = vand.u32 %v374, 4294901760
    %v376 = vsub.f32 %v374, %v375
    %v377 = vand.u32 %v376, 4294901760
    %378 = vmatpush1.xpose.msra.mxu0 %v377
    %379 = vmatprep.subr.mxu0 0.0
    %v380 = vand.u32 %v205, 4294901760
    %v381 = vsub.f32 %v205, %v380
    %v382 = vand.u32 %v381, 4294901760
    %v383 = vsub.f32 %v381, %v382
    %v384 = vand.u32 %v383, 4294901760
    %385 = vmatpush1.xpose.msra.mxu0 %v384
    %386 = vmatprep.subr.mxu0 0.0
    %v387 = vand.u32 %v206, 4294901760
    %v388 = vsub.f32 %v206, %v387
    %v389 = vand.u32 %v388, 4294901760
    %v390 = vsub.f32 %v388, %v389
    %v391 = vand.u32 %v390, 4294901760
    %392 = vmatpush1.xpose.msra.mxu0 %v391
    %393 = vmatprep.subr.mxu0 0.0
    %v394 = vand.u32 %v207, 4294901760
    %v395 = vsub.f32 %v207, %v394
    %v396 = vand.u32 %v395, 4294901760
    %v397 = vsub.f32 %v395, %v396
    %v398 = vand.u32 %v397, 4294901760
    %399 = vmatpush1.xpose.msra.mxu0 %v398
    %400 = vmatprep.subr.mxu0 0.0
    %v401 = vand.u32 %v208, 4294901760
    %v402 = vsub.f32 %v208, %v401
    %v403 = vand.u32 %v402, 4294901760
    %v404 = vsub.f32 %v402, %v403
    %v405 = vand.u32 %v404, 4294901760
    %406 = vmatpush1.xpose.msra.mxu0 %v405
    %407 = vmatprep.subr.mxu0 0.0
    %v408 = vand.u32 %v209, 4294901760
    %v409 = vsub.f32 %v209, %v408
    %v410 = vand.u32 %v409, 4294901760
    %v411 = vsub.f32 %v409, %v410
    %v412 = vand.u32 %v411, 4294901760
    %413 = vmatpush1.xpose.msra.mxu0 %v412
    %414 = vmatprep.subr.mxu0 0.0
    %v415 = vand.u32 %v210, 4294901760
    %v416 = vsub.f32 %v210, %v415
    %v417 = vand.u32 %v416, 4294901760
    %v418 = vsub.f32 %v416, %v417
    %v419 = vand.u32 %v418, 4294901760
    %420 = vmatpush1.xpose.msra.mxu0 %v419
    %421 = vmatprep.subr.mxu0 0.0
    %v422 = vand.u32 %v211, 4294901760
    %v423 = vsub.f32 %v211, %v422
    %v424 = vand.u32 %v423, 4294901760
    %v425 = vsub.f32 %v423, %v424
    %v426 = vand.u32 %v425, 4294901760
    %427 = vmatpush1.xpose.msra.mxu0 %v426
    %428 = vmatprep.subr.mxu0 0.0
    %v429 = vand.u32 %v212, 4294901760
    %v430 = vsub.f32 %v212, %v429
    %v431 = vand.u32 %v430, 4294901760
    %v432 = vsub.f32 %v430, %v431
    %v433 = vand.u32 %v432, 4294901760
    %434 = vmatpush1.xpose.msra.mxu0 %v433
    %435 = vmatprep.subr.mxu0 0.0
    %v436 = vand.u32 %v213, 4294901760
    %v437 = vsub.f32 %v213, %v436
    %v438 = vand.u32 %v437, 4294901760
    %v439 = vsub.f32 %v437, %v438
    %v440 = vand.u32 %v439, 4294901760
    %441 = vmatpush1.xpose.msra.mxu0 %v440
    %442 = vmatprep.subr.mxu0 0.0
    %v443 = vand.u32 %v214, 4294901760
    %v444 = vsub.f32 %v214, %v443
    %v445 = vand.u32 %v444, 4294901760
    %v446 = vsub.f32 %v444, %v445
    %v447 = vand.u32 %v446, 4294901760
    %448 = vmatpush1.xpose.msra.mxu0 %v447
    %449 = vmatprep.subr.mxu0 0.0
    %v450 = vand.u32 %v215, 4294901760
    %v451 = vsub.f32 %v215, %v450
    %v452 = vand.u32 %v451, 4294901760
    %v453 = vsub.f32 %v451, %v452
    %v454 = vand.u32 %v453, 4294901760
    %455 = vmatpush1.xpose.msra.mxu0 %v454
    %456 = vmatprep.subr.mxu0 0.0
    %457 = vmatpush1.xpose.msra.mxu0 0.0
    %458 = vmatprep.subr.mxu0 0.0
    %459 = vmatpush1.xpose.msra.mxu0 0.0
    %460 = vmatprep.subr.mxu0 0.0
    %461 = vmatpush1.xpose.msra.mxu0 0.0
    %462 = vmatprep.subr.mxu0 0.0
    %463 = vmatpush1.xpose.msra.mxu0 0.0
    %464 = vmatprep.subr.mxu0 0.0
    %465 = vmatpush1.xpose.msra.mxu0 0.0
    %466 = vmatprep.subr.mxu0 0.0
    %467 = vmatpush1.xpose.msra.mxu0 0.0
    %468 = vmatprep.subr.mxu0 0.0
    %469 = vmatpush1.xpose.msra.mxu0 0.0
    %470 = vmatprep.subr.mxu0 0.0
    %471 = vmatpush1.xpose.msra.mxu0 0.0
    %472 = vmatprep.subr.mxu0 0.0
    %473 = vmatpush1.xpose.msra.mxu0 0.0
    %474 = vmatprep.subr.mxu0 0.0
    %475 = vmatpush1.xpose.msra.mxu0 0.0
    %476 = vmatprep.subr.mxu0 0.0
    %477 = vmatpush1.xpose.msra.mxu0 0.0
    %478 = vmatprep.subr.mxu0 0.0
    %479 = vmatpush1.xpose.msra.mxu0 0.0
    %480 = vmatprep.subr.mxu0 0.0
    %481 = vmatpush1.xpose.msra.mxu0 0.0
    %482 = vmatprep.subr.mxu0 0.0
    %483 = vmatpush1.xpose.msra.mxu0 0.0
    %484 = vmatprep.subr.mxu0 0.0
    %485 = vmatpush1.xpose.msra.mxu0 0.0
    %486 = vmatprep.subr.mxu0 0.0
    %487 = vmatpush1.xpose.msra.mxu0 0.0
    %488 = vmatprep.mubr.f32.mxu0 0.0
    %v489 = vand.u32 %v196, 4294901760
    %490 = vmatmul.mubr.f32.gmra.mrb[0].mxu0 %v489
    %v491 = vpop.f32.mrb[0].mxu0
    %v492 = vadd.f32 %v311, %v491
    %v493 = vpop.f32.mrb[0].mxu0
    %494 = vmatprep.mubr.f32.mxu0 0.0
    %v495 = vand.u32 %v197, 4294901760
    %496 = vmatmul.mubr.f32.gmra.mrb[0].mxu0 %v495
    %v497 = vpop.f32.mrb[0].mxu0
    %v498 = vadd.f32 %v321, %v497
    %v499 = vpop.f32.mrb[0].mxu0
    %500 = vmatprep.mubr.f32.mxu0 0.0
    %v501 = vand.u32 %v198, 4294901760
    %502 = vmatmul.mubr.f32.gmra.mrb[0].mxu0 %v501
    %v503 = vpop.f32.mrb[0].mxu0
    %v504 = vadd.f32 %v331, %v503
    %v505 = vpop.f32.mrb[0].mxu0
    %506 = vmatprep.mubr.f32.mxu0 0.0
    %v507 = vand.u32 %v199, 4294901760
    %508 = vmatmul.mubr.f32.gmra.mrb[0].mxu0 %v507
    %v509 = vpop.f32.mrb[0].mxu0
    %v510 = vadd.f32 %v341, %v509
    %v511 = vpop.f32.mrb[0].mxu0
    %512 = vdwg.mxu0
    %513 = vmatprep.subr.mxu0 0.0
    %v514 = vand.u32 %v200, 4294901760
    %v515 = vsub.f32 %v200, %v514
    %516 = vmatpush1.xpose.msra.mxu0 %v515
    %517 = vmatprep.subr.mxu0 0.0
    %v518 = vand.u32 %v201, 4294901760
    %v519 = vsub.f32 %v201, %v518
    %520 = vmatpush1.xpose.msra.mxu0 %v519
    %521 = vmatprep.subr.mxu0 0.0
    %v522 = vand.u32 %v202, 4294901760
    %v523 = vsub.f32 %v202, %v522
    %524 = vmatpush1.xpose.msra.mxu0 %v523
    %525 = vmatprep.subr.mxu0 0.0
    %v526 = vand.u32 %v203, 4294901760
    %v527 = vsub.f32 %v203, %v526
    %528 = vmatpush1.xpose.msra.mxu0 %v527
    %529 = vmatprep.subr.mxu0 0.0
    %v530 = vand.u32 %v204, 4294901760
    %v531 = vsub.f32 %v204, %v530
    %532 = vmatpush1.xpose.msra.mxu0 %v531
    %533 = vmatprep.subr.mxu0 0.0
    %v534 = vand.u32 %v205, 4294901760
    %v535 = vsub.f32 %v205, %v534
    %536 = vmatpush1.xpose.msra.mxu0 %v535
    %537 = vmatprep.subr.mxu0 0.0
    %v538 = vand.u32 %v206, 4294901760
    %v539 = vsub.f32 %v206, %v538
    %540 = vmatpush1.xpose.msra.mxu0 %v539
    %541 = vmatprep.subr.mxu0 0.0
    %v542 = vand.u32 %v207, 4294901760
    %v543 = vsub.f32 %v207, %v542
    %544 = vmatpush1.xpose.msra.mxu0 %v543
    %545 = vmatprep.subr.mxu0 0.0
    %v546 = vand.u32 %v208, 4294901760
    %v547 = vsub.f32 %v208, %v546
    %548 = vmatpush1.xpose.msra.mxu0 %v547
    %549 = vmatprep.subr.mxu0 0.0
    %v550 = vand.u32 %v209, 4294901760
    %v551 = vsub.f32 %v209, %v550
    %552 = vmatpush1.xpose.msra.mxu0 %v551
    %553 = vmatprep.subr.mxu0 0.0
    %v554 = vand.u32 %v210, 4294901760
    %v555 = vsub.f32 %v210, %v554
    %556 = vmatpush1.xpose.msra.mxu0 %v555
    %557 = vmatprep.subr.mxu0 0.0
    %v558 = vand.u32 %v211, 4294901760
    %v559 = vsub.f32 %v211, %v558
    %560 = vmatpush1.xpose.msra.mxu0 %v559
    %561 = vmatprep.subr.mxu0 0.0
    %v562 = vand.u32 %v212, 4294901760
    %v563 = vsub.f32 %v212, %v562
    %564 = vmatpush1.xpose.msra.mxu0 %v563
    %565 = vmatprep.subr.mxu0 0.0
    %v566 = vand.u32 %v213, 4294901760
    %v567 = vsub.f32 %v213, %v566
    %568 = vmatpush1.xpose.msra.mxu0 %v567
    %569 = vmatprep.subr.mxu0 0.0
    %v570 = vand.u32 %v214, 4294901760
    %v571 = vsub.f32 %v214, %v570
    %572 = vmatpush1.xpose.msra.mxu0 %v571
    %573 = vmatprep.subr.mxu0 0.0
    %v574 = vand.u32 %v215, 4294901760
    %v575 = vsub.f32 %v215, %v574
    %576 = vmatpush1.xpose.msra.mxu0 %v575
    %577 = vmatprep.subr.mxu0 0.0
    %578 = vmatpush1.xpose.msra.mxu0 0.0
    %579 = vmatprep.subr.mxu0 0.0
    %580 = vmatpush1.xpose.msra.mxu0 0.0
    %581 = vmatprep.subr.mxu0 0.0
    %582 = vmatpush1.xpose.msra.mxu0 0.0
    %583 = vmatprep.subr.mxu0 0.0
    %584 = vmatpush1.xpose.msra.mxu0 0.0
    %585 = vmatprep.subr.mxu0 0.0
    %586 = vmatpush1.xpose.msra.mxu0 0.0
    %587 = vmatprep.subr.mxu0 0.0
    %588 = vmatpush1.xpose.msra.mxu0 0.0
    %589 = vmatprep.subr.mxu0 0.0
    %590 = vmatpush1.xpose.msra.mxu0 0.0
    %591 = vmatprep.subr.mxu0 0.0
    %592 = vmatpush1.xpose.msra.mxu0 0.0
    %593 = vmatprep.subr.mxu0 0.0
    %594 = vmatpush1.xpose.msra.mxu0 0.0
    %595 = vmatprep.subr.mxu0 0.0
    %596 = vmatpush1.xpose.msra.mxu0 0.0
    %597 = vmatprep.subr.mxu0 0.0
    %598 = vmatpush1.xpose.msra.mxu0 0.0
    %599 = vmatprep.subr.mxu0 0.0
    %600 = vmatpush1.xpose.msra.mxu0 0.0
    %601 = vmatprep.subr.mxu0 0.0
    %602 = vmatpush1.xpose.msra.mxu0 0.0
    %603 = vmatprep.subr.mxu0 0.0
    %604 = vmatpush1.xpose.msra.mxu0 0.0
    %605 = vmatprep.subr.mxu0 0.0
    %606 = vmatpush1.xpose.msra.mxu0 0.0
    %607 = vmatprep.subr.mxu0 0.0
    %608 = vmatpush1.xpose.msra.mxu0 0.0
    %609 = vmatprep.mubr.f32.mxu0 0.0
    %v610 = vand.u32 %v196, 4294901760
    %v611 = vsub.f32 %v196, %v610
    %612 = vmatmul.mubr.f32.gmra.mrb[0].mxu0 %v611
    %v613 = vpop.f32.mrb[0].mxu0
    %v614 = vadd.f32 %v492, %v613
    %v615 = vpop.f32.mrb[0].mxu0
    %616 = vmatprep.mubr.f32.mxu0 0.0
    %v617 = vand.u32 %v197, 4294901760
    %v618 = vsub.f32 %v197, %v617
    %619 = vmatmul.mubr.f32.gmra.mrb[0].mxu0 %v618
    %v620 = vpop.f32.mrb[0].mxu0
    %v621 = vadd.f32 %v498, %v620
    %v622 = vpop.f32.mrb[0].mxu0
    %623 = vmatprep.mubr.f32.mxu0 0.0
    %v624 = vand.u32 %v198, 4294901760
    %v625 = vsub.f32 %v198, %v624
    %626 = vmatmul.mubr.f32.gmra.mrb[0].mxu0 %v625
    %v627 = vpop.f32.mrb[0].mxu0
    %v628 = vadd.f32 %v504, %v627
    %v629 = vpop.f32.mrb[0].mxu0
    %630 = vmatprep.mubr.f32.mxu0 0.0
    %v631 = vand.u32 %v199, 4294901760
    %v632 = vsub.f32 %v199, %v631
    %633 = vmatmul.mubr.f32.gmra.mrb[0].mxu0 %v632
    %v634 = vpop.f32.mrb[0].mxu0
    %v635 = vadd.f32 %v510, %v634
    %v636 = vpop.f32.mrb[0].mxu0
    %637 = vdwg.mxu0
    %638 = vmatprep.subr.mxu0 0.0
    %v639 = vand.u32 %v200, 4294901760
    %640 = vmatpush1.xpose.msra.mxu0 %v639
    %641 = vmatprep.subr.mxu0 0.0
    %v642 = vand.u32 %v201, 4294901760
    %643 = vmatpush1.xpose.msra.mxu0 %v642
    %644 = vmatprep.subr.mxu0 0.0
    %v645 = vand.u32 %v202, 4294901760
    %646 = vmatpush1.xpose.msra.mxu0 %v645
    %647 = vmatprep.subr.mxu0 0.0
    %v648 = vand.u32 %v203, 4294901760
    %649 = vmatpush1.xpose.msra.mxu0 %v648
    %650 = vmatprep.subr.mxu0 0.0
    %v651 = vand.u32 %v204, 4294901760
    %652 = vmatpush1.xpose.msra.mxu0 %v651
    %653 = vmatprep.subr.mxu0 0.0
    %v654 = vand.u32 %v205, 4294901760
    %655 = vmatpush1.xpose.msra.mxu0 %v654
    %656 = vmatprep.subr.mxu0 0.0
    %v657 = vand.u32 %v206, 4294901760
    %658 = vmatpush1.xpose.msra.mxu0 %v657
    %659 = vmatprep.subr.mxu0 0.0
    %v660 = vand.u32 %v207, 4294901760
    %661 = vmatpush1.xpose.msra.mxu0 %v660
    %662 = vmatprep.subr.mxu0 0.0
    %v663 = vand.u32 %v208, 4294901760
    %664 = vmatpush1.xpose.msra.mxu0 %v663
    %665 = vmatprep.subr.mxu0 0.0
    %v666 = vand.u32 %v209, 4294901760
    %667 = vmatpush1.xpose.msra.mxu0 %v666
    %668 = vmatprep.subr.mxu0 0.0
    %v669 = vand.u32 %v210, 4294901760
    %670 = vmatpush1.xpose.msra.mxu0 %v669
    %671 = vmatprep.subr.mxu0 0.0
    %v672 = vand.u32 %v211, 4294901760
    %673 = vmatpush1.xpose.msra.mxu0 %v672
    %674 = vmatprep.subr.mxu0 0.0
    %v675 = vand.u32 %v212, 4294901760
    %676 = vmatpush1.xpose.msra.mxu0 %v675
    %677 = vmatprep.subr.mxu0 0.0
    %v678 = vand.u32 %v213, 4294901760
    %679 = vmatpush1.xpose.msra.mxu0 %v678
    %680 = vmatprep.subr.mxu0 0.0
    %v681 = vand.u32 %v214, 4294901760
    %682 = vmatpush1.xpose.msra.mxu0 %v681
    %683 = vmatprep.subr.mxu0 0.0
    %v684 = vand.u32 %v215, 4294901760
    %685 = vmatpush1.xpose.msra.mxu0 %v684
    %686 = vmatprep.subr.mxu0 0.0
    %687 = vmatpush1.xpose.msra.mxu0 0.0
    %688 = vmatprep.subr.mxu0 0.0
    %689 = vmatpush1.xpose.msra.mxu0 0.0
    %690 = vmatprep.subr.mxu0 0.0
    %691 = vmatpush1.xpose.msra.mxu0 0.0
    %692 = vmatprep.subr.mxu0 0.0
    %693 = vmatpush1.xpose.msra.mxu0 0.0
    %694 = vmatprep.subr.mxu0 0.0
    %695 = vmatpush1.xpose.msra.mxu0 0.0
    %696 = vmatprep.subr.mxu0 0.0
    %697 = vmatpush1.xpose.msra.mxu0 0.0
    %698 = vmatprep.subr.mxu0 0.0
    %699 = vmatpush1.xpose.msra.mxu0 0.0
    %700 = vmatprep.subr.mxu0 0.0
    %701 = vmatpush1.xpose.msra.mxu0 0.0
    %702 = vmatprep.subr.mxu0 0.0
    %703 = vmatpush1.xpose.msra.mxu0 0.0
    %704 = vmatprep.subr.mxu0 0.0
    %705 = vmatpush1.xpose.msra.mxu0 0.0
    %706 = vmatprep.subr.mxu0 0.0
    %707 = vmatpush1.xpose.msra.mxu0 0.0
    %708 = vmatprep.subr.mxu0 0.0
    %709 = vmatpush1.xpose.msra.mxu0 0.0
    %710 = vmatprep.subr.mxu0 0.0
    %711 = vmatpush1.xpose.msra.mxu0 0.0
    %712 = vmatprep.subr.mxu0 0.0
    %713 = vmatpush1.xpose.msra.mxu0 0.0
    %714 = vmatprep.subr.mxu0 0.0
    %715 = vmatpush1.xpose.msra.mxu0 0.0
    %716 = vmatprep.subr.mxu0 0.0
    %717 = vmatpush1.xpose.msra.mxu0 0.0
    %718 = vmatprep.mubr.f32.mxu0 0.0
    %v719 = vand.u32 %v196, 4294901760
    %v720 = vsub.f32 %v196, %v719
    %v721 = vand.u32 %v720, 4294901760
    %722 = vmatmul.mubr.f32.gmra.mrb[0].mxu0 %v721
    %v723 = vpop.f32.mrb[0].mxu0
    %v724 = vadd.f32 %v614, %v723
    %v725 = vpop.f32.mrb[0].mxu0
    %726 = vmatprep.mubr.f32.mxu0 0.0
    %v727 = vand.u32 %v197, 4294901760
    %v728 = vsub.f32 %v197, %v727
    %v729 = vand.u32 %v728, 4294901760
    %730 = vmatmul.mubr.f32.gmra.mrb[0].mxu0 %v729
    %v731 = vpop.f32.mrb[0].mxu0
    %v732 = vadd.f32 %v621, %v731
    %v733 = vpop.f32.mrb[0].mxu0
    %734 = vmatprep.mubr.f32.mxu0 0.0
    %v735 = vand.u32 %v198, 4294901760
    %v736 = vsub.f32 %v198, %v735
    %v737 = vand.u32 %v736, 4294901760
    %738 = vmatmul.mubr.f32.gmra.mrb[0].mxu0 %v737
    %v739 = vpop.f32.mrb[0].mxu0
    %v740 = vadd.f32 %v628, %v739
    %v741 = vpop.f32.mrb[0].mxu0
    %742 = vmatprep.mubr.f32.mxu0 0.0
    %v743 = vand.u32 %v199, 4294901760
    %v744 = vsub.f32 %v199, %v743
    %v745 = vand.u32 %v744, 4294901760
    %746 = vmatmul.mubr.f32.gmra.mrb[0].mxu0 %v745
    %v747 = vpop.f32.mrb[0].mxu0
    %v748 = vadd.f32 %v635, %v747
    %v749 = vpop.f32.mrb[0].mxu0
    %750 = vdwg.mxu0
    %751 = vmatprep.subr.mxu0 0.0
    %v752 = vand.u32 %v200, 4294901760
    %v753 = vsub.f32 %v200, %v752
    %v754 = vand.u32 %v753, 4294901760
    %755 = vmatpush1.xpose.msra.mxu0 %v754
    %756 = vmatprep.subr.mxu0 0.0
    %v757 = vand.u32 %v201, 4294901760
    %v758 = vsub.f32 %v201, %v757
    %v759 = vand.u32 %v758, 4294901760
    %760 = vmatpush1.xpose.msra.mxu0 %v759
    %761 = vmatprep.subr.mxu0 0.0
    %v762 = vand.u32 %v202, 4294901760
    %v763 = vsub.f32 %v202, %v762
    %v764 = vand.u32 %v763, 4294901760
    %765 = vmatpush1.xpose.msra.mxu0 %v764
    %766 = vmatprep.subr.mxu0 0.0
    %v767 = vand.u32 %v203, 4294901760
    %v768 = vsub.f32 %v203, %v767
    %v769 = vand.u32 %v768, 4294901760
    %770 = vmatpush1.xpose.msra.mxu0 %v769
    %771 = vmatprep.subr.mxu0 0.0
    %v772 = vand.u32 %v204, 4294901760
    %v773 = vsub.f32 %v204, %v772
    %v774 = vand.u32 %v773, 4294901760
    %775 = vmatpush1.xpose.msra.mxu0 %v774
    %776 = vmatprep.subr.mxu0 0.0
    %v777 = vand.u32 %v205, 4294901760
    %v778 = vsub.f32 %v205, %v777
    %v779 = vand.u32 %v778, 4294901760
    %780 = vmatpush1.xpose.msra.mxu0 %v779
    %781 = vmatprep.subr.mxu0 0.0
    %v782 = vand.u32 %v206, 4294901760
    %v783 = vsub.f32 %v206, %v782
    %v784 = vand.u32 %v783, 4294901760
    %785 = vmatpush1.xpose.msra.mxu0 %v784
    %786 = vmatprep.subr.mxu0 0.0
    %v787 = vand.u32 %v207, 4294901760
    %v788 = vsub.f32 %v207, %v787
    %v789 = vand.u32 %v788, 4294901760
    %790 = vmatpush1.xpose.msra.mxu0 %v789
    %791 = vmatprep.subr.mxu0 0.0
    %v792 = vand.u32 %v208, 4294901760
    %v793 = vsub.f32 %v208, %v792
    %v794 = vand.u32 %v793, 4294901760
    %795 = vmatpush1.xpose.msra.mxu0 %v794
    %796 = vmatprep.subr.mxu0 0.0
    %v797 = vand.u32 %v209, 4294901760
    %v798 = vsub.f32 %v209, %v797
    %v799 = vand.u32 %v798, 4294901760
    %800 = vmatpush1.xpose.msra.mxu0 %v799
    %801 = vmatprep.subr.mxu0 0.0
    %v802 = vand.u32 %v210, 4294901760
    %v803 = vsub.f32 %v210, %v802
    %v804 = vand.u32 %v803, 4294901760
    %805 = vmatpush1.xpose.msra.mxu0 %v804
    %806 = vmatprep.subr.mxu0 0.0
    %v807 = vand.u32 %v211, 4294901760
    %v808 = vsub.f32 %v211, %v807
    %v809 = vand.u32 %v808, 4294901760
    %810 = vmatpush1.xpose.msra.mxu0 %v809
    %811 = vmatprep.subr.mxu0 0.0
    %v812 = vand.u32 %v212, 4294901760
    %v813 = vsub.f32 %v212, %v812
    %v814 = vand.u32 %v813, 4294901760
    %815 = vmatpush1.xpose.msra.mxu0 %v814
    %816 = vmatprep.subr.mxu0 0.0
    %v817 = vand.u32 %v213, 4294901760
    %v818 = vsub.f32 %v213, %v817
    %v819 = vand.u32 %v818, 4294901760
    %820 = vmatpush1.xpose.msra.mxu0 %v819
    %821 = vmatprep.subr.mxu0 0.0
    %v822 = vand.u32 %v214, 4294901760
    %v823 = vsub.f32 %v214, %v822
    %v824 = vand.u32 %v823, 4294901760
    %825 = vmatpush1.xpose.msra.mxu0 %v824
    %826 = vmatprep.subr.mxu0 0.0
    %v827 = vand.u32 %v215, 4294901760
    %v828 = vsub.f32 %v215, %v827
    %v829 = vand.u32 %v828, 4294901760
    %830 = vmatpush1.xpose.msra.mxu0 %v829
    %831 = vmatprep.subr.mxu0 0.0
    %832 = vmatpush1.xpose.msra.mxu0 0.0
    %833 = vmatprep.subr.mxu0 0.0
    %834 = vmatpush1.xpose.msra.mxu0 0.0
    %835 = vmatprep.subr.mxu0 0.0
    %836 = vmatpush1.xpose.msra.mxu0 0.0
    %837 = vmatprep.subr.mxu0 0.0
    %838 = vmatpush1.xpose.msra.mxu0 0.0
    %839 = vmatprep.subr.mxu0 0.0
    %840 = vmatpush1.xpose.msra.mxu0 0.0
    %841 = vmatprep.subr.mxu0 0.0
    %842 = vmatpush1.xpose.msra.mxu0 0.0
    %843 = vmatprep.subr.mxu0 0.0
    %844 = vmatpush1.xpose.msra.mxu0 0.0
    %845 = vmatprep.subr.mxu0 0.0
    %846 = vmatpush1.xpose.msra.mxu0 0.0
    %847 = vmatprep.subr.mxu0 0.0
    %848 = vmatpush1.xpose.msra.mxu0 0.0
    %849 = vmatprep.subr.mxu0 0.0
    %850 = vmatpush1.xpose.msra.mxu0 0.0
    %851 = vmatprep.subr.mxu0 0.0
    %852 = vmatpush1.xpose.msra.mxu0 0.0
    %853 = vmatprep.subr.mxu0 0.0
    %854 = vmatpush1.xpose.msra.mxu0 0.0
    %855 = vmatprep.subr.mxu0 0.0
    %856 = vmatpush1.xpose.msra.mxu0 0.0
    %857 = vmatprep.subr.mxu0 0.0
    %858 = vmatpush1.xpose.msra.mxu0 0.0
    %859 = vmatprep.subr.mxu0 0.0
    %860 = vmatpush1.xpose.msra.mxu0 0.0
    %861 = vmatprep.subr.mxu0 0.0
    %862 = vmatpush1.xpose.msra.mxu0 0.0
    %863 = vmatprep.mubr.f32.mxu0 0.0
    %v864 = vand.u32 %v196, 4294901760
    %865 = vmatmul.mubr.f32.gmra.mrb[0].mxu0 %v864
    %v866 = vpop.f32.mrb[0].mxu0
    %v867 = vadd.f32 %v724, %v866
    %v868 = vpop.f32.mrb[0].mxu0
    %869 = vmatprep.mubr.f32.mxu0 0.0
    %v870 = vand.u32 %v197, 4294901760
    %871 = vmatmul.mubr.f32.gmra.mrb[0].mxu0 %v870
    %v872 = vpop.f32.mrb[0].mxu0
    %v873 = vadd.f32 %v732, %v872
    %v874 = vpop.f32.mrb[0].mxu0
    %875 = vmatprep.mubr.f32.mxu0 0.0
    %v876 = vand.u32 %v198, 4294901760
    %877 = vmatmul.mubr.f32.gmra.mrb[0].mxu0 %v876
    %v878 = vpop.f32.mrb[0].mxu0
    %v879 = vadd.f32 %v740, %v878
    %v880 = vpop.f32.mrb[0].mxu0
    %881 = vmatprep.mubr.f32.mxu0 0.0
    %v882 = vand.u32 %v199, 4294901760
    %883 = vmatmul.mubr.f32.gmra.mrb[0].mxu0 %v882
    %v884 = vpop.f32.mrb[0].mxu0
    %v885 = vadd.f32 %v748, %v884
    %v886 = vpop.f32.mrb[0].mxu0
    %887 = vdwg.mxu0
    %888 = vmatprep.subr.mxu0 0.0
    %v889 = vand.u32 %v200, 4294901760
    %890 = vmatpush1.xpose.msra.mxu0 %v889
    %891 = vmatprep.subr.mxu0 0.0
    %v892 = vand.u32 %v201, 4294901760
    %893 = vmatpush1.xpose.msra.mxu0 %v892
    %894 = vmatprep.subr.mxu0 0.0
    %v895 = vand.u32 %v202, 4294901760
    %896 = vmatpush1.xpose.msra.mxu0 %v895
    %897 = vmatprep.subr.mxu0 0.0
    %v898 = vand.u32 %v203, 4294901760
    %899 = vmatpush1.xpose.msra.mxu0 %v898
    %900 = vmatprep.subr.mxu0 0.0
    %v901 = vand.u32 %v204, 4294901760
    %902 = vmatpush1.xpose.msra.mxu0 %v901
    %903 = vmatprep.subr.mxu0 0.0
    %v904 = vand.u32 %v205, 4294901760
    %905 = vmatpush1.xpose.msra.mxu0 %v904
    %906 = vmatprep.subr.mxu0 0.0
    %v907 = vand.u32 %v206, 4294901760
    %908 = vmatpush1.xpose.msra.mxu0 %v907
    %909 = vmatprep.subr.mxu0 0.0
    %v910 = vand.u32 %v207, 4294901760
    %911 = vmatpush1.xpose.msra.mxu0 %v910
    %912 = vmatprep.subr.mxu0 0.0
    %v913 = vand.u32 %v208, 4294901760
    %914 = vmatpush1.xpose.msra.mxu0 %v913
    %915 = vmatprep.subr.mxu0 0.0
    %v916 = vand.u32 %v209, 4294901760
    %917 = vmatpush1.xpose.msra.mxu0 %v916
    %918 = vmatprep.subr.mxu0 0.0
    %v919 = vand.u32 %v210, 4294901760
    %920 = vmatpush1.xpose.msra.mxu0 %v919
    %921 = vmatprep.subr.mxu0 0.0
    %v922 = vand.u32 %v211, 4294901760
    %923 = vmatpush1.xpose.msra.mxu0 %v922
    %924 = vmatprep.subr.mxu0 0.0
    %v925 = vand.u32 %v212, 4294901760
    %926 = vmatpush1.xpose.msra.mxu0 %v925
    %927 = vmatprep.subr.mxu0 0.0
    %v928 = vand.u32 %v213, 4294901760
    %929 = vmatpush1.xpose.msra.mxu0 %v928
    %930 = vmatprep.subr.mxu0 0.0
    %v931 = vand.u32 %v214, 4294901760
    %932 = vmatpush1.xpose.msra.mxu0 %v931
    %933 = vmatprep.subr.mxu0 0.0
    %v934 = vand.u32 %v215, 4294901760
    %935 = vmatpush1.xpose.msra.mxu0 %v934
    %936 = vmatprep.subr.mxu0 0.0
    %937 = vmatpush1.xpose.msra.mxu0 0.0
    %938 = vmatprep.subr.mxu0 0.0
    %939 = vmatpush1.xpose.msra.mxu0 0.0
    %940 = vmatprep.subr.mxu0 0.0
    %941 = vmatpush1.xpose.msra.mxu0 0.0
    %942 = vmatprep.subr.mxu0 0.0
    %943 = vmatpush1.xpose.msra.mxu0 0.0
    %944 = vmatprep.subr.mxu0 0.0
    %945 = vmatpush1.xpose.msra.mxu0 0.0
    %946 = vmatprep.subr.mxu0 0.0
    %947 = vmatpush1.xpose.msra.mxu0 0.0
    %948 = vmatprep.subr.mxu0 0.0
    %949 = vmatpush1.xpose.msra.mxu0 0.0
    %950 = vmatprep.subr.mxu0 0.0
    %951 = vmatpush1.xpose.msra.mxu0 0.0
    %952 = vmatprep.subr.mxu0 0.0
    %953 = vmatpush1.xpose.msra.mxu0 0.0
    %954 = vmatprep.subr.mxu0 0.0
    %955 = vmatpush1.xpose.msra.mxu0 0.0
    %956 = vmatprep.subr.mxu0 0.0
    %957 = vmatpush1.xpose.msra.mxu0 0.0
    %958 = vmatprep.subr.mxu0 0.0
    %959 = vmatpush1.xpose.msra.mxu0 0.0
    %960 = vmatprep.subr.mxu0 0.0
    %961 = vmatpush1.xpose.msra.mxu0 0.0
    %962 = vmatprep.subr.mxu0 0.0
    %963 = vmatpush1.xpose.msra.mxu0 0.0
    %964 = vmatprep.subr.mxu0 0.0
    %965 = vmatpush1.xpose.msra.mxu0 0.0
    %966 = vmatprep.subr.mxu0 0.0
    %967 = vmatpush1.xpose.msra.mxu0 0.0
    %968 = vmatprep.mubr.f32.mxu0 0.0
    %v969 = vand.u32 %v196, 4294901760
    %970 = vmatmul.mubr.f32.gmra.mrb[0].mxu0 %v969
    %v971 = vpop.f32.mrb[0].mxu0
    %v972 = vadd.f32 %v867, %v971
    %v973 = vpop.f32.mrb[0].mxu0
    %974 = vmatprep.mubr.f32.mxu0 0.0
    %v975 = vand.u32 %v197, 4294901760
    %976 = vmatmul.mubr.f32.gmra.mrb[0].mxu0 %v975
    %v977 = vpop.f32.mrb[0].mxu0
    %v978 = vadd.f32 %v873, %v977
    %v979 = vpop.f32.mrb[0].mxu0
    %980 = vmatprep.mubr.f32.mxu0 0.0
    %v981 = vand.u32 %v198, 4294901760
    %982 = vmatmul.mubr.f32.gmra.mrb[0].mxu0 %v981
    %v983 = vpop.f32.mrb[0].mxu0
    %v984 = vadd.f32 %v879, %v983
    %v985 = vpop.f32.mrb[0].mxu0
    %986 = vmatprep.mubr.f32.mxu0 0.0
    %v987 = vand.u32 %v199, 4294901760
    %988 = vmatmul.mubr.f32.gmra.mrb[0].mxu0 %v987
    %v989 = vpop.f32.mrb[0].mxu0
    %v990 = vadd.f32 %v885, %v989
    %v991 = vpop.f32.mrb[0].mxu0
    %992 = vdwg.mxu0
    %v993 = vadd.f32 %v51, %v972
    %v994 = vadd.f32 %v52, %v978
    %v995 = vadd.f32 %v53, %v984
    %v996 = vadd.f32 %v54, %v990
    %997 = vst [vmem:[#allocation9] sm:$0xff] %v993
    %998 = vst [vmem:[#allocation9 + $0x8] sm:$0xff] %v994
    %999 = vst [vmem:[#allocation9 + $0x10] sm:$0xff] %v995
    %1000 = vst [vmem:[#allocation9 + $0x18] sm:$0xff] %v996
    // Predicated region
    $region30: #{tpu_custom_call.1} parent=1 // pred_check
      _
    $region31: #{tpu_custom_call.1} parent=1 // pred_check_branch
      %1002 = sbr.rel (0) target = $region33
    $region32: #{tpu_custom_call.1} parent=1 // pred_region
      %s1004 = ssub.s32 512, 512
      %1005 = vsyncadd [#allocation6], %s1004
      %s1006 = sshll.u32 [#allocation9], 4
      %s1007 = int_to_ptr.vmem [resolvable:$true] %s1006
      %1012 = dma.vmem_to_hbm [thread:$0]  %s1007, 512, %s5, [#allocation6], 128, 128, 8
    $region33: #{tpu_custom_call.1} parent=1 // pred_fallthru
      _
    // Predicated region
    $region34: #{tpu_custom_call.1} parent=1 // pred_check
      _
    $region35: #{tpu_custom_call.1} parent=1 // pred_check_branch
      %1014 = sbr.rel (0) target = $region37
    $region36: #{tpu_custom_call.1} parent=1 // pred_region
      %1015 = dma.done [#allocation6], 512
    $region37: #{tpu_custom_call.1} parent=1 // pred_fallthru
      _
    %1016 = vsyncpa [#allocation5], 1
    %1017 = vsyncpa [#allocation8], 1
    %1018 = vsyncpa [#allocation6], 1

</llo_original>
